<compile_context>
chip_gen: v6e
topology: v6e:2x2x1
jax: 0.10.0
libtpu: 0.0.40
codegen_flags: <defaults>
</compile_context>

<pallas_src>
import jax
import jax.numpy as jnp
from jax.experimental import pallas as pl
from jax.experimental.pallas import tpu as pltpu

NUM_CLASSES = 9
_LANE = 128                               # classifier head lane-padded to one vreg width
_SINGLE_BLOCK_MAX_BYTES = 2 * 1024 * 1024  # below this a single un-pipelined block is fine


def _sublane_multiple(itemsize: int) -> int:
    # f32 -> 8, bf16 -> 16, int8/fp8 -> 32
    return {4: 8, 2: 16, 1: 32}.get(itemsize, 8)


def _vmem_budgets():
    """Generation-aware VMEM budgets (v7x has only 64 MiB per TensorCore)."""
    vmem_bytes = 64 * 1024 * 1024
    try:
        vmem_bytes = int(pltpu.get_tpu_info().vmem_capacity_bytes)
    except Exception:
        pass
    feat_buf = min(8 * 1024 * 1024, vmem_bytes // 8)   # per (double-buffered) stream buffer
    limit = min(40 * 1024 * 1024, vmem_bytes // 2)     # scoped VMEM limit
    return feat_buf, limit


def _make_kernel(t_total: int, time_tile: int, needs_mask: bool, fold: bool):
    """Mean-pool over time (trailing reduction grid axis) then linear head."""
    inv_t = 1.0 / float(t_total)

    def kernel(feat_ref, w_ref, b_ref, out_ref, acc_ref):
        t = pl.program_id(1)
        last = pl.num_programs(1) - 1

        @pl.when(t == 0)
        def _():
            acc_ref[...] = jnp.zeros_like(acc_ref)

        def accumulate(masked):
            x = feat_ref[...].astype(jnp.float32)          # (bt, tt, D)
            if masked:
                # Zero the padded frames of the ragged final time tile.
                row = jax.lax.broadcasted_iota(jnp.int32, (1, time_tile, 1), 1)
                x = jnp.where(t * time_tile + row < t_total, x, 0.0)
            bt, tt, d = x.shape
            if fold:
                # Fold time in groups of 8 sublanes: pure VALU vreg adds; no
                # per-step cross-sublane reduction / relayout.
                acc_ref[...] += x.reshape(bt, tt // 8, 8, d).sum(axis=1)
            else:
                acc_ref[...] += jnp.sum(x, axis=1)

        if needs_mask:
            # Mask only on the final (ragged) step; hot loop stays unmasked.
            @pl.when(t != last)
            def _():
                accumulate(False)

            @pl.when(t == last)
            def _():
                accumulate(True)
        else:
            accumulate(False)

        @pl.when(t == last)
        def _():
            if fold:
                pooled = jnp.sum(acc_ref[...], axis=1) * inv_t   # (bt, D)
            else:
                pooled = acc_ref[...] * inv_t
            # Default MXU precision is plenty for these tolerances; the 9 real
            # output columns are unaffected by the zero lane padding.
            logits = jnp.dot(pooled, w_ref[...],
                             preferred_element_type=jnp.float32)  # (bt, 128)
            out_ref[0] = (logits + b_ref[...]).astype(out_ref.dtype)

    return kernel


def nn_model_forward(features: jax.Array, w: jax.Array, b: jax.Array,
                     *, time_tile: int | None = None):
    """features: [B, T, D] (f32 or bf16); w: [D, 9]; b: [9] -> {'high': [B, 9]}"""
    B, T, D = features.shape
    itemsize = jnp.dtype(features.dtype).itemsize
    sub = _sublane_multiple(itemsize)
    feat_budget, vmem_limit = _vmem_budgets()

    # --- batch tiling: >=2 "parallel" batch blocks whenever B >= 2 so both
    #     v7x TensorCores pull HBM (a no-op on single-core v5e/v6e). ---------
    if B >= 16:
        b_tile = 8
    elif B >= 2:
        b_tile = (B + 1) // 2
    else:
        b_tile = 1
    grid_b = pl.cdiv(B, b_tile)
    # Out-of-range rows of a ragged final batch block read unspecified data and
    # produce garbage logits, but every valid row depends only on its own data
    # and the padded rows are sliced off below.

    # --- time tiling ---------------------------------------------------------
    per_row_bytes = b_tile * D * itemsize
    stream_bytes = T * per_row_bytes
    if time_tile is None:
        if stream_bytes <= _SINGLE_BLOCK_MAX_BYTES or T < sub:
            time_tile = T                 # tiny stream: single block is fine
        else:
            # >=2 time steps (compute overlaps next tile's DMA), each tile
            # sublane-aligned and inside the per-buffer VMEM budget.
            rows = min(1024, feat_budget // per_row_bytes, pl.cdiv(T, 2))
            time_tile = max(sub, (rows // sub) * sub)
            if time_tile >= T:
                time_tile = T
    else:
        time_tile = max(1, min(T, time_tile))
        if time_tile < T:                 # tiled time dim must be sublane-aligned
            time_tile = (time_tile // sub) * sub
            if time_tile == 0:
                time_tile = T

    grid_t = pl.cdiv(T, time_tile)
    needs_mask = (T % time_tile) != 0
    fold = (time_tile % 8) == 0

    # Lane-pad the classifier head 9 -> 128 (dense vst; no masked partial-lane
    # weight/output layouts); sliced back to 9 outside the kernel.
    w_pad = jnp.zeros((D, _LANE), jnp.float32).at[:, :NUM_CLASSES].set(
        w.astype(jnp.float32))
    b_pad = jnp.zeros((1, _LANE), jnp.float32).at[:, :NUM_CLASSES].set(
        b.astype(jnp.float32).reshape(1, NUM_CLASSES))

    acc_shape = (b_tile, 8, D) if fold else (b_tile, D)

    out3 = pl.pallas_call(
        _make_kernel(T, time_tile, needs_mask, fold),
        # 3-D output: each batch block owns a full (b_tile, 128) slab, so the
        # last two block dims always equal the array dims (no edge blocks).
        out_shape=jax.ShapeDtypeStruct((grid_b, b_tile, _LANE), jnp.float32),
        grid_spec=pltpu.PrefetchScalarGridSpec(
            num_scalar_prefetch=0,
            grid=(grid_b, grid_t),
            in_specs=[
                # Streamed feature tile: (b_tile, time_tile, D).
                pl.BlockSpec((b_tile, time_tile, D), lambda bi, ti: (bi, ti, 0)),
                # Weight and bias: resident, same block every step.
                pl.BlockSpec((D, _LANE), lambda bi, ti: (0, 0)),
                pl.BlockSpec((1, _LANE), lambda bi, ti: (0, 0)),
            ],
            # Output block index constant across the time (reduction) axis
            # -> stays resident in VMEM; written once on the final time step.
            out_specs=pl.BlockSpec((1, b_tile, _LANE), lambda bi, ti: (bi, 0, 0)),
            scratch_shapes=[pltpu.VMEM(acc_shape, jnp.float32)],
        ),
        compiler_params=pltpu.CompilerParams(
            dimension_semantics=("parallel", "arbitrary"),
            vmem_limit_bytes=vmem_limit,
        ),
    )(features, w_pad, b_pad)

    out = out3.reshape(grid_b * b_tile, _LANE)[:B, :NUM_CLASSES]
    return {"high": out}


def nn_model_reference(features, w, b):
    pooled = jnp.mean(features.astype(jnp.float32), axis=1)
    return {"high": pooled @ w.astype(jnp.float32) + b.astype(jnp.float32)}


if __name__ == "__main__":
    key = jax.random.PRNGKey(0)
    k_feat, k_w, k_b, k_feat2 = jax.random.split(key, 4)

    # --- Primary check: small shapes consistent with the module -------------
    B, T, D = 2, 16, 32
    features = jax.random.normal(k_feat, (B, T, D), dtype=jnp.float32)
    bound = 1.0 / (D ** 0.5)   # nn.Linear(feat_dim, 9) default uniform init
    w = jax.random.uniform(k_w, (D, NUM_CLASSES), jnp.float32, -bound, bound)
    b = jax.random.uniform(k_b, (NUM_CLASSES,), jnp.float32, -bound, bound)

    out = nn_model_forward(features, w, b)
    out = jax.tree_util.tree_map(jax.block_until_ready, out)
    ref = nn_model_reference(features, w, b)
    assert out["high"].shape == (B, NUM_CLASSES)
    assert jnp.allclose(out["high"], ref["high"], atol=1e-5, rtol=1e-5)

    # --- Secondary: ragged T, multi-step reduction, 2 parallel batch blocks --
    B2, T2, D2 = 4, 50, 128
    feats2 = jax.random.normal(k_feat2, (B2, T2, D2), dtype=jnp.float32)
    bound2 = 1.0 / (D2 ** 0.5)
    w2 = jax.random.uniform(k_w, (D2, NUM_CLASSES), jnp.float32, -bound2, bound2)
    b2 = jax.random.uniform(k_b, (NUM_CLASSES,), jnp.float32, -bound2, bound2)

    out2 = nn_model_forward(feats2, w2, b2, time_tile=16)   # 4 time steps, ragged tail
    out2 = jax.tree_util.tree_map(jax.block_until_ready, out2)
    ref2 = nn_model_reference(feats2, w2, b2)
    assert jnp.allclose(out2["high"], ref2["high"], atol=1e-4, rtol=1e-4)

    # --- Tertiary: bf16 streamed features, f32 accumulation ------------------
    feats_bf16 = feats2.astype(jnp.bfloat16)
    out3 = nn_model_forward(feats_bf16, w2, b2, time_tile=16)
    out3 = jax.tree_util.tree_map(jax.block_until_ready, out3)
    ref3 = nn_model_reference(feats_bf16, w2, b2)
    assert jnp.allclose(out3["high"], ref3["high"], atol=5e-3, rtol=5e-3)

    print("KERNEL_OK")
</pallas_src>

<mosaic_0001>
module attributes {stable_mosaic.version = 11 : i64} {
  func.func @kernel(%arg0: i32, %arg1: i32, %arg2: memref<1x16x32xf32, #tpu.memory_space<vmem>>, %arg3: memref<32x128xf32, #tpu.memory_space<vmem>>, %arg4: memref<1x128xf32, #tpu.memory_space<vmem>>, %arg5: memref<1x1x128xf32, #tpu.memory_space<vmem>>, %arg6: memref<1x8x32xf32, #tpu.memory_space<vmem>>) attributes {dimension_semantics = [#tpu.dimension_semantics<parallel>, #tpu.dimension_semantics<arbitrary>], iteration_bounds = array<i64: 2, 1>, scalar_prefetch = 0 : i64, scratch_operands = 1 : i64, tpu.core_type = #tpu.core_type<tc>, window_params = [{transform_indices = @transform_0, window_bounds = array<i64: 1, 16, 32>}, {pipeline_mode = #tpu.pipeline_mode<synchronous>, transform_indices = @transform_1, window_bounds = array<i64: 32, 128>}, {pipeline_mode = #tpu.pipeline_mode<synchronous>, transform_indices = @transform_2, window_bounds = array<i64: 1, 128>}, {transform_indices = @transform_3, window_bounds = array<i64: 1, 1, 128>}]} {
    %c0_i32 = arith.constant 0 : i32
    %0 = arith.cmpi eq, %arg1, %c0_i32 : i32
    %1 = arith.extui %0 : i1 to i32
    %c0_i32_0 = arith.constant 0 : i32
    %2 = arith.cmpi ne, %1, %c0_i32_0 : i32
    scf.if %2 {
      %cst_11 = arith.constant 0.000000e+00 : f32
      %12 = vector.broadcast %cst_11 : f32 to vector<1x8x32xf32>
      %c0_12 = arith.constant 0 : index
      %c0_13 = arith.constant 0 : index
      %c0_14 = arith.constant 0 : index
      %13 = vector.load %arg6[%c0_12, %c0_13, %c0_14] : memref<1x8x32xf32, #tpu.memory_space<vmem>>, vector<1x8x32xf32>
      tpu.vector_store %arg6[%c0_12, %c0_13, %c0_14], %12 {strides = array<i32>} : memref<1x8x32xf32, #tpu.memory_space<vmem>>, vector<1x8x32xf32>,
    } else {
    }
    %c0 = arith.constant 0 : index
    %c0_1 = arith.constant 0 : index
    %c0_2 = arith.constant 0 : index
    %3 = vector.load %arg2[%c0, %c0_1, %c0_2] : memref<1x16x32xf32, #tpu.memory_space<vmem>>, vector<1x16x32xf32>
    %c0_3 = arith.constant 0 : index
    %c0_4 = arith.constant 0 : index
    %c0_5 = arith.constant 0 : index
    %4 = vector.load %arg6[%c0_3, %c0_4, %c0_5] : memref<1x8x32xf32, #tpu.memory_space<vmem>>, vector<1x8x32xf32>
    %5 = vector.shape_cast %3 : vector<1x16x32xf32> to vector<1x2x8x32xf32>
    %cst = arith.constant dense<0.000000e+00> : vector<1x8x32xf32>
    %6 = vector.multi_reduction <add>, %5, %cst [1] : vector<1x2x8x32xf32> to vector<1x8x32xf32>
    %7 = arith.addf %4, %6 : vector<1x8x32xf32>
    %c0_6 = arith.constant 0 : index
    %c0_7 = arith.constant 0 : index
    %c0_8 = arith.constant 0 : index
    %8 = vector.load %arg6[%c0_6, %c0_7, %c0_8] : memref<1x8x32xf32, #tpu.memory_space<vmem>>, vector<1x8x32xf32>
    tpu.vector_store %arg6[%c0_6, %c0_7, %c0_8], %7 {strides = array<i32>} : memref<1x8x32xf32, #tpu.memory_space<vmem>>, vector<1x8x32xf32>,
    %c0_i32_9 = arith.constant 0 : i32
    %9 = arith.cmpi eq, %arg1, %c0_i32_9 : i32
    %10 = arith.extui %9 : i1 to i32
    %c0_i32_10 = arith.constant 0 : i32
    %11 = arith.cmpi ne, %10, %c0_i32_10 : i32
    scf.if %11 {
      %c0_11 = arith.constant 0 : index
      %c0_12 = arith.constant 0 : index
      %c0_13 = arith.constant 0 : index
      %12 = vector.load %arg6[%c0_11, %c0_12, %c0_13] : memref<1x8x32xf32, #tpu.memory_space<vmem>>, vector<1x8x32xf32>
      %cst_14 = arith.constant dense<0.000000e+00> : vector<1x32xf32>
      %13 = vector.multi_reduction <add>, %12, %cst_14 [1] : vector<1x8x32xf32> to vector<1x32xf32>
      %cst_15 = arith.constant 6.250000e-02 : f32
      %14 = vector.broadcast %cst_15 : f32 to vector<1x32xf32>
      %15 = arith.mulf %13, %14 : vector<1x32xf32>
      %c0_16 = arith.constant 0 : index
      %c0_17 = arith.constant 0 : index
      %16 = vector.load %arg3[%c0_16, %c0_17] : memref<32x128xf32, #tpu.memory_space<vmem>>, vector<32x128xf32>
      %cst_18 = arith.constant dense<0.000000e+00> : vector<1x128xf32>
      %17 = tpu.matmul %15, %16, %cst_18 {dimension_numbers = #tpu.dot_dimension_numbers<[1], [0], [0], [1], [0, 0, 1, 1], [], []>} : vector<1x32xf32>, vector<32x128xf32>, vector<1x128xf32> -> vector<1x128xf32>
      %c0_19 = arith.constant 0 : index
      %c0_20 = arith.constant 0 : index
      %18 = vector.load %arg4[%c0_19, %c0_20] : memref<1x128xf32, #tpu.memory_space<vmem>>, vector<1x128xf32>
      %19 = arith.addf %17, %18 : vector<1x128xf32>
      %c0_21 = arith.constant 0 : index
      %c0_22 = arith.constant 0 : index
      %c0_23 = arith.constant 0 : index
      %20 = vector.load %arg5[%c0_21, %c0_22, %c0_23] : memref<1x1x128xf32, #tpu.memory_space<vmem>>, vector<1x1x128xf32>
      %21 = vector.shape_cast %20 : vector<1x1x128xf32> to vector<1x128xf32>
      %22 = vector.shape_cast %19 : vector<1x128xf32> to vector<1x1x128xf32>
      tpu.vector_store %arg5[%c0_21, %c0_22, %c0_23], %22 {strides = array<i32>} : memref<1x1x128xf32, #tpu.memory_space<vmem>>, vector<1x1x128xf32>,
    } else {
    }
    return
  }
  func.func @transform_0(%arg0: i32, %arg1: i32) -> (i32, i32, i32) {
    %c0_i32 = arith.constant 0 : i32
    %c0_i32_0 = arith.constant 0 : i32
    return %arg0, %arg1, %c0_i32 : i32, i32, i32
  }
  func.func @transform_1(%arg0: i32, %arg1: i32) -> (i32, i32) {
    %c0_i32 = arith.constant 0 : i32
    %c0_i32_0 = arith.constant 0 : i32
    %c0_i32_1 = arith.constant 0 : i32
    return %c0_i32, %c0_i32_0 : i32, i32
  }
  func.func @transform_2(%arg0: i32, %arg1: i32) -> (i32, i32) {
    %c0_i32 = arith.constant 0 : i32
    %c0_i32_0 = arith.constant 0 : i32
    %c0_i32_1 = arith.constant 0 : i32
    return %c0_i32, %c0_i32_0 : i32, i32
  }
  func.func @transform_3(%arg0: i32, %arg1: i32) -> (i32, i32, i32) {
    %c0_i32 = arith.constant 0 : i32
    %c0_i32_0 = arith.constant 0 : i32
    %c0_i32_1 = arith.constant 0 : i32
    return %arg0, %c0_i32, %c0_i32_0 : i32, i32, i32
  }
}

</mosaic_0001>

<llo_original>
// kernel: tpu_custom_call.1
$region0: #{tpu_custom_call.1}
  #allocation0 [shape = 'u32[]', space=smem, size = 0x4, offset = 0x4, fixed_abs, tag = 'smem constant byte address 0x4 - core index']
  #allocation1 [shape = 'u32[144,128]{1,0:T(1,128)}', space=vmem, size = 0x12000, scoped, tag = 'internal scratch']
  #allocation2 [shape = 'f32[1,8,32]{2,1,0:T(8,128)}', space=vmem, size = 0x1000, scoped, tag = 'scratch operand']
  %s0 = inlined_call_operand.hbm [shape: f32[2,16,32], index: 0, kind: input, shape index: {}]
  %s1 = inlined_call_operand.hbm [shape: f32[32,128], index: 1, kind: input, shape index: {}]
  %s2 = inlined_call_operand.vmem [shape: f32[1,128], index: 2, kind: input, shape index: {}]
  %s3 = inlined_call_operand.hbm [shape: f32[2,1,128], index: 3, kind: output, shape index: {}]
  %s4 = sld [smem:[#allocation0]]
  $region61: #{tpu_custom_call.1} parent=0
    _
  %s6 = ssub.s32 1, %s4
  %s7 = scalar_select 0, %s6, %s4
  $region1: #{tpu_custom_call.1} parent=0
    #allocation3 [shape = 'u8[16384]{0}', space=vmem, size = 0x4000, scoped, tag = 'input window, operand 0']
    #allocation4 [shape = 's32[2]{0}', space=sflag, size = 0x8, scoped, tag = 'scoped memory for tpu_custom_call.1']
    #allocation5 [shape = 's32[2]{0}', space=sflag, size = 0x8, scoped, tag = 'scoped memory for tpu_custom_call.1']
    #allocation6 [shape = 'u8[16384]{0}', space=vmem, size = 0x4000, scoped, tag = 'input window, operand 1, single buffered']
    #allocation7 [shape = 's32[1]{0}', space=sflag, size = 0x4, scoped, tag = 'scoped memory for tpu_custom_call.1']
    #allocation8 [shape = 'u8[1024]{0}', space=vmem, size = 0x400, scoped, tag = 'output window, operand 0']
    %8 = vsyncpa [#allocation4], 0
    %s9 = scalar_lea.sflag [#allocation4], 1
    %10 = vsyncpa %s9, 0
    %11 = vsyncpa [#allocation7], 0
    %12 = vsyncpa [#allocation5], 0
    %s13 = scalar_lea.sflag [#allocation5], 1
    %14 = vsyncpa %s13, 0
    loop: start=0, step=1, limit=4
    $region2: #{tpu_custom_call.1} parent=1 // loop_pre_header
      _
    $region3: #{tpu_custom_call.1} parent=1 // loop_header
      %s16 = sphi 0, %s20
      %p17 = scmp.ge.s32.totalorder %s16, 4
      %s23 = sphi 0, %s35
      %s24 = sphi 0, %s31
      %s25 = sphi 0, %s23
      %s26 = sphi 0, %s24
      %s27 = sphi 0, %s25
      %s28 = sphi 0, %s26
      %s40 = sphi 0, %s42
      %s43 = sphi 0, %s40
      %s44 = sphi 0, %s43
      %s60 = sphi 0, %s44
      %s64 = sphi 0, %s64
      %s66 = sphi 0, %s64
      %s67 = sphi 0, %s66
      %s81 = sphi 0, %s67
      %s85 = sphi 0, %s85
      %s87 = sphi 0, %s85
      %s88 = sphi 0, %s87
      %s102 = sphi 0, %s88
      %s108 = sphi 0, %s110
      %s111 = sphi 0, %s108
      %s112 = sphi 0, %s111
      %s128 = sphi 0, %s112
    $region4: #{tpu_custom_call.1} parent=1 // loop_header_branch
      %19 = sbr.rel (%p17) target = $region8
    $region5: #{tpu_custom_call.1} parent=1 // loop_body
      %s21 = ssub.s32 %s16, 1
      %s22 = ssub.s32 %s16, 2
      %s29 = sadd.s32 1, %s24
      %p30 = scmp.ge.s32.totalorder %s29, 1
      %s31 = scalar_select %p30, 0, %s29
      %s32 = sadd.s32 1, %s23
      %s33 = scalar_select %p30, %s32, %s23
      %p34 = scmp.ge.s32.totalorder %s33, 2
      %s35 = scalar_select %p34, 0, %s33
      %s36 = ssub.s32 %s23, %s35
      %s37 = ssub.s32 %s24, %s31
      %s38 = sor.u32 %s36, %s37
      %p39 = scmp.eq.s32.totalorder %s38, 0
      %s41 = sadd.s32 %s40, 1
      %s42 = scalar_select %p39, %s40, %s41
      %p45 = pneg %p39
      %p46 = scmp.eq.s32.totalorder %s16, 1
      %p47 = por %p45, %p46
      %p48 = scmp.ne.s32.totalorder %s40, %s43
      %p49 = scmp.eq.s32.totalorder %s16, 0
      %p50 = por %p48, %p49
      %p51 = scmp.ne.s32.totalorder %s40, %s43
      %p52 = scmp.eq.s32.totalorder %s21, 1
      %p53 = por %p51, %p52
      %p54 = scmp.ne.s32.totalorder %s43, %s44
      %p55 = scmp.eq.s32.totalorder %s21, 0
      %p56 = por %p54, %p55
      %p57 = scmp.ne.s32.totalorder %s43, %s44
      %p58 = scmp.eq.s32.totalorder %s22, 1
      %p59 = por %p57, %p58
      %p61 = scmp.ne.s32.totalorder %s44, %s60
      %p62 = scmp.eq.s32.totalorder %s22, 0
      %p63 = por %p61, %p62
      %s65 = sadd.s32 %s64, 1
      %p68 = scmp.eq.s32.totalorder %s16, 1
      %p69 = scmp.ne.s32.totalorder %s64, %s66
      %p70 = scmp.eq.s32.totalorder %s16, 0
      %p71 = por %p69, %p70
      %p72 = scmp.ne.s32.totalorder %s64, %s66
      %p73 = scmp.eq.s32.totalorder %s21, 1
      %p74 = por %p72, %p73
      %p75 = scmp.ne.s32.totalorder %s66, %s67
      %p76 = scmp.eq.s32.totalorder %s21, 0
      %p77 = por %p75, %p76
      %p78 = scmp.ne.s32.totalorder %s66, %s67
      %p79 = scmp.eq.s32.totalorder %s22, 1
      %p80 = por %p78, %p79
      %p82 = scmp.ne.s32.totalorder %s67, %s81
      %p83 = scmp.eq.s32.totalorder %s22, 0
      %p84 = por %p82, %p83
      %s86 = sadd.s32 %s85, 1
      %p89 = scmp.eq.s32.totalorder %s16, 1
      %p90 = scmp.ne.s32.totalorder %s85, %s87
      %p91 = scmp.eq.s32.totalorder %s16, 0
      %p92 = por %p90, %p91
      %p93 = scmp.ne.s32.totalorder %s85, %s87
      %p94 = scmp.eq.s32.totalorder %s21, 1
      %p95 = por %p93, %p94
      %p96 = scmp.ne.s32.totalorder %s87, %s88
      %p97 = scmp.eq.s32.totalorder %s21, 0
      %p98 = por %p96, %p97
      %p99 = scmp.ne.s32.totalorder %s87, %s88
      %p100 = scmp.eq.s32.totalorder %s22, 1
      %p101 = por %p99, %p100
      %p103 = scmp.ne.s32.totalorder %s88, %s102
      %p104 = scmp.eq.s32.totalorder %s22, 0
      %p105 = por %p103, %p104
      %s106 = ssub.s32 %s23, %s35
      %p107 = scmp.eq.s32.totalorder %s106, 0
      %s109 = sadd.s32 %s108, 1
      %s110 = scalar_select %p107, %s108, %s109
      %p113 = pneg %p107
      %p114 = scmp.eq.s32.totalorder %s16, 1
      %p115 = por %p113, %p114
      %p116 = scmp.ne.s32.totalorder %s108, %s111
      %p117 = scmp.eq.s32.totalorder %s16, 0
      %p118 = por %p116, %p117
      %p119 = scmp.ne.s32.totalorder %s108, %s111
      %p120 = scmp.eq.s32.totalorder %s21, 1
      %p121 = por %p119, %p120
      %p122 = scmp.ne.s32.totalorder %s111, %s112
      %p123 = scmp.eq.s32.totalorder %s21, 0
      %p124 = por %p122, %p123
      %p125 = scmp.ne.s32.totalorder %s111, %s112
      %p126 = scmp.eq.s32.totalorder %s22, 1
      %p127 = por %p125, %p126
      %p129 = scmp.ne.s32.totalorder %s112, %s128
      %p130 = scmp.eq.s32.totalorder %s22, 0
      %p131 = por %p129, %p130
      %p132 = scmp.le.s32.totalorder 1, %s16
      %p133 = scmp.lt.s32.totalorder %s16, 3
      %p134 = pnand %p132, %p133
      %p135 = pneg %p134
      // Predicated region
      $region9: #{tpu_custom_call.1} parent=5 // pred_check
        _
      $region10: #{tpu_custom_call.1} parent=5 // pred_check_branch
        %137 = sbr.rel (%p134) target = $region12
      $region11: #{tpu_custom_call.1} parent=5 // pred_region
        %s138 = ssub.s32 %s16, 1
        // Predicated region
        $region13: #{tpu_custom_call.1} parent=11 // pred_check
          %p139 = pneg %p77
        $region14: #{tpu_custom_call.1} parent=11 // pred_check_branch
          %141 = sbr.rel (%p139) target = $region16
        $region15: #{tpu_custom_call.1} parent=11 // pred_region
          %s143 = ssub.s32 512, 512
          %144 = vsyncadd [#allocation7], %s143
          %s145 = sshll.u32 [#allocation6], 4
          %s146 = int_to_ptr.vmem [resolvable:$true] %s145
          %151 = dma.hbm_to_vmem [thread:$0]  %s1, 512, %s146, [#allocation7], 128, 128, 8
        $region16: #{tpu_custom_call.1} parent=11 // pred_fallthru
          _
        // Predicated region
        $region17: #{tpu_custom_call.1} parent=11 // pred_check
          %p152 = pneg %p98
        $region18: #{tpu_custom_call.1} parent=11 // pred_check_branch
          %154 = sbr.rel (%p152) target = $region20
        $region19: #{tpu_custom_call.1} parent=11 // pred_region
          _
        $region20: #{tpu_custom_call.1} parent=11 // pred_fallthru
          _
      $region12: #{tpu_custom_call.1} parent=5 // pred_fallthru
        _
      %p155 = scmp.lt.s32.totalorder %s16, 2
      // Predicated region
      $region21: #{tpu_custom_call.1} parent=5 // pred_check
        %p156 = pneg %p155
      $region22: #{tpu_custom_call.1} parent=5 // pred_check_branch
        %158 = sbr.rel (%p156) target = $region24
      $region23: #{tpu_custom_call.1} parent=5 // pred_region
        // Predicated region
        $region25: #{tpu_custom_call.1} parent=23 // pred_check
          %p159 = pneg %p50
        $region26: #{tpu_custom_call.1} parent=23 // pred_check_branch
          %161 = sbr.rel (%p159) target = $region28
        $region27: #{tpu_custom_call.1} parent=23 // pred_region
          %s162 = sand.u32 %s40, 1
          %s163 = scalar_lea.sflag [#allocation4], %s162
          %s164 = sand.u32 %s40, 1
          %s165 = smul.addr %s164, 16
          %s166 = scalar_lea.vmem [#allocation3], %s165
          %s167 = smul.u32 2, %s24
          %s169 = ssub.s32 256, 256
          %170 = vsyncadd %s163, %s169
          %s171 = smul.addr %s23, 2
          %s172 = sadd.s32 %s167, %s171
          %s173 = smul.addr %s172, 128
          %s174 = scalar_lea.hbm %s0, %s173
          %s175 = sshll.u32 %s166, 4
          %s176 = int_to_ptr.vmem [resolvable:$true] %s175
          %181 = dma.hbm_to_vmem [thread:$0]  %s174, 256, %s176, %s163, 128, 128, 8
        $region28: #{tpu_custom_call.1} parent=23 // pred_fallthru
          _
      $region24: #{tpu_custom_call.1} parent=5 // pred_fallthru
        _
      %p182 = scmp.le.s32.totalorder 1, %s16
      %p183 = scmp.lt.s32.totalorder %s16, 3
      %p184 = pnand %p182, %p183
      %p185 = pneg %p184
      // Predicated region
      $region29: #{tpu_custom_call.1} parent=5 // pred_check
        _
      $region30: #{tpu_custom_call.1} parent=5 // pred_check_branch
        %187 = sbr.rel (%p184) target = $region32
      $region31: #{tpu_custom_call.1} parent=5 // pred_region
        %s188 = ssub.s32 %s16, 1
        %s189 = sand.u32 %s43, 1
        %s190 = scalar_lea.sflag [#allocation4], %s189
        %s191 = sand.u32 %s43, 1
        %s192 = smul.addr %s191, 16
        %s193 = scalar_lea.vmem [#allocation3], %s192
        // Predicated region
        $region33: #{tpu_custom_call.1} parent=31 // pred_check
          %p194 = pneg %p56
        $region34: #{tpu_custom_call.1} parent=31 // pred_check_branch
          %196 = sbr.rel (%p194) target = $region36
        $region35: #{tpu_custom_call.1} parent=31 // pred_region
          %197 = dma.done %s190, 256
        $region36: #{tpu_custom_call.1} parent=31 // pred_fallthru
          _
        // Predicated region
        $region37: #{tpu_custom_call.1} parent=31 // pred_check
          %p198 = pneg %p77
        $region38: #{tpu_custom_call.1} parent=31 // pred_check_branch
          %200 = sbr.rel (%p198) target = $region40
        $region39: #{tpu_custom_call.1} parent=31 // pred_region
          %201 = dma.done [#allocation7], 512
        $region40: #{tpu_custom_call.1} parent=31 // pred_fallthru
          _
        %s202 = sand.u32 %s43, 1
        %s203 = scalar_lea.sflag [#allocation4], %s202
        %s204 = sand.u32 %s43, 1
        %s205 = smul.addr %s204, 16
        %s206 = scalar_lea.vmem [#allocation3], %s205
        %p207 = pneg %p56
        %p208 = pneg %p53
        %p209 = pneg %p77
        %p210 = pneg %p74
        %p211 = pneg %p98
        %p212 = pneg %p95
        %p213 = pneg %p124
        %p214 = pneg %p121
        %s215 = sand.u32 %s111, 1
        %s216 = scalar_lea.sflag [#allocation5], %s215
        %s217 = sand.u32 %s111, 1
        %s218 = scalar_lea.vmem [#allocation8], %s217
        %s219 = smul.u32 2, %s26
        %p220 = scmp.eq.s32.totalorder %s26, 0
        // Predicated region
        $region41: #{tpu_custom_call.1} parent=31 // pred_check
          %p221 = pneg %p220
        $region42: #{tpu_custom_call.1} parent=31 // pred_check_branch
          %223 = sbr.rel (%p221) target = $region44
        $region43: #{tpu_custom_call.1} parent=31 // pred_region
          %vm224 = vcmask 261120
          %225 = vst.msk [vmem:[#allocation2] sm:$0xff] %vm224, 0.0
        $region44: #{tpu_custom_call.1} parent=31 // pred_fallthru
          _
        %v226 = vld [vmem:[%s193] sm:$0xff]
        %v227 = vld [vmem:[%s193 + $0x8] sm:$0xff]
        %v228 = vld [vmem:[#allocation2] sm:$0xff]
        %vm229 = vcmask 261120
        %v230 = vsel %vm229, %v226, 0.0
        %v231 = vsel %vm229, %v227, 0.0
        %v232 = vadd.f32 %v230, %v231
        %v233 = vadd.f32 %v228, %v232
        %234 = vst.msk [vmem:[#allocation2] sm:$0xff] %vm229, %v233
        // Predicated region
        $region45: #{tpu_custom_call.1} parent=31 // pred_check
          %p235 = pneg %p220
        $region46: #{tpu_custom_call.1} parent=31 // pred_check_branch
          %237 = sbr.rel (%p235) target = $region48
        $region47: #{tpu_custom_call.1} parent=31 // pred_region
          %v238 = vld [vmem:[#allocation2] sm:$0xff]
          %v239 = vsel %vm229, %v238, 0.0
          %v240 = vrot.slane %v239, 4
          %v241 = vadd.f32 %v239, %v240
          %v242 = vrot.slane %v241, 2
          %v243 = vadd.f32 %v241, %v242
          %v244 = vrot.slane %v243, 1
          %v245 = vadd.f32 %v243, %v244
          %v246 = vmul.f32 %v245, 0.0625
          %v247 = vld [vmem:[#allocation6] sm:$0xff]
          %v248 = vld [vmem:[#allocation6 + $0x8] sm:$0xff]
          %v249 = vld [vmem:[#allocation6 + $0x10] sm:$0xff]
          %v250 = vld [vmem:[#allocation6 + $0x18] sm:$0xff]
          %v251 = vld [vmem:[%s2] sm:$0x1]
          %v253 = vsel %vm229, %v246, 0
          %255 = vmatprep.subr.mxu0 0.0
          %256 = vmatpush1.msra.mxu0 0.0
          %257 = vmatprep.subr.mxu0 0.0
          %258 = vmatpush1.msra.mxu0 0.0
          %259 = vmatprep.subr.mxu0 0.0
          %260 = vmatpush1.msra.mxu0 0.0
          %261 = vmatprep.subr.mxu0 0.0
          %262 = vmatpush1.msra.mxu0 0.0
          %263 = vmatprep.subr.mxu0 0.0
          %264 = vmatpush1.msra.mxu0 0.0
          %265 = vmatprep.subr.mxu0 0.0
          %266 = vmatpush1.msra.mxu0 0.0
          %267 = vmatprep.subr.mxu0 0.0
          %268 = vmatpush1.msra.mxu0 0.0
          %269 = vmatprep.subr.mxu0 0.0
          %270 = vmatpush1.msra.mxu0 0.0
          %271 = vmatprep.subr.mxu0 0.0
          %272 = vmatpush1.msra.mxu0 0.0
          %273 = vmatprep.subr.mxu0 0.0
          %274 = vmatpush1.msra.mxu0 0.0
          %275 = vmatprep.subr.mxu0 0.0
          %276 = vmatpush1.msra.mxu0 0.0
          %277 = vmatprep.subr.mxu0 0.0
          %278 = vmatpush1.msra.mxu0 0.0
          %279 = vmatprep.subr.mxu0 0.0
          %280 = vmatpush1.msra.mxu0 %v250
          %281 = vmatprep.subr.mxu0 0.0
          %282 = vmatpush1.msra.mxu0 %v249
          %283 = vmatprep.subr.mxu0 0.0
          %284 = vmatpush1.msra.mxu0 %v248
          %285 = vmatprep.subr.mxu0 0.0
          %286 = vmatpush1.msra.mxu0 %v247
          %287 = vmatprep.subr.mxu0 0.0
          %288 = vmatpush2.msra.mxu0 0.0
          %289 = vmatprep.subr.mxu0 0.0
          %290 = vmatpush2.msra.mxu0 0.0
          %291 = vmatprep.subr.mxu0 0.0
          %292 = vmatpush2.msra.mxu0 0.0
          %293 = vmatprep.subr.mxu0 0.0
          %294 = vmatpush2.msra.mxu0 0.0
          %295 = vmatprep.subr.mxu0 0.0
          %296 = vmatpush2.msra.mxu0 0.0
          %297 = vmatprep.subr.mxu0 0.0
          %298 = vmatpush2.msra.mxu0 0.0
          %299 = vmatprep.subr.mxu0 0.0
          %300 = vmatpush2.msra.mxu0 0.0
          %301 = vmatprep.subr.mxu0 0.0
          %302 = vmatpush2.msra.mxu0 0.0
          %303 = vmatprep.subr.mxu0 0.0
          %304 = vmatpush2.msra.mxu0 0.0
          %305 = vmatprep.subr.mxu0 0.0
          %306 = vmatpush2.msra.mxu0 0.0
          %307 = vmatprep.subr.mxu0 0.0
          %308 = vmatpush2.msra.mxu0 0.0
          %309 = vmatprep.subr.mxu0 0.0
          %310 = vmatpush2.msra.mxu0 0.0
          %311 = vmatprep.subr.mxu0 0.0
          %312 = vmatpush2.msra.mxu0 0.0
          %313 = vmatprep.subr.mxu0 0.0
          %314 = vmatpush2.msra.mxu0 0.0
          %315 = vmatprep.subr.mxu0 0.0
          %316 = vmatpush2.msra.mxu0 0.0
          %317 = vmatprep.subr.mxu0 0.0
          %318 = vmatpush2.msra.mxu0 0.0
          %319 = vmatprep.mubr.f32.mxu0 0.0
          %320 = vmatmul.mubr.f32.gmra.mxu0 %v253
          %v321 = vpop.f32.mrf.mxu0
          %v322 = vadd.f32 %v251, %v321
          %v323 = vpop.f32.mrf.mxu0
          %324 = vdwg.mxu0
          %325 = vst [vmem:[%s218] sm:$0x1] %v322
        $region48: #{tpu_custom_call.1} parent=31 // pred_fallthru
          _
        %s326 = sand.u32 %s111, 1
        %s327 = scalar_lea.sflag [#allocation5], %s326
        %s328 = sand.u32 %s111, 1
        %s329 = scalar_lea.vmem [#allocation8], %s328
        // Predicated region
        $region49: #{tpu_custom_call.1} parent=31 // pred_check
          %p330 = pneg %p121
        $region50: #{tpu_custom_call.1} parent=31 // pred_check_branch
          %332 = sbr.rel (%p330) target = $region52
        $region51: #{tpu_custom_call.1} parent=31 // pred_region
          %s334 = ssub.s32 16, 16
          %335 = vsyncadd %s327, %s334
          %s336 = smul.addr %s25, 16
          %s337 = scalar_lea.hbm %s3, %s336
          %s339 = sshll.u32 %s329, 4
          %s340 = int_to_ptr.vmem [resolvable:$true] %s339
          %342 = dma.vmem_to_hbm [thread:$0]  %s340, 16, %s337, %s327
        $region52: #{tpu_custom_call.1} parent=31 // pred_fallthru
          _
      $region32: #{tpu_custom_call.1} parent=5 // pred_fallthru
        _
      %p343 = scmp.le.s32.totalorder 2, %s16
      // Predicated region
      $region53: #{tpu_custom_call.1} parent=5 // pred_check
        %p344 = pneg %p343
      $region54: #{tpu_custom_call.1} parent=5 // pred_check_branch
        %346 = sbr.rel (%p344) target = $region56
      $region55: #{tpu_custom_call.1} parent=5 // pred_region
        %s347 = ssub.s32 %s16, 2
        // Predicated region
        $region57: #{tpu_custom_call.1} parent=55 // pred_check
          %p348 = pneg %p127
        $region58: #{tpu_custom_call.1} parent=55 // pred_check_branch
          %350 = sbr.rel (%p348) target = $region60
        $region59: #{tpu_custom_call.1} parent=55 // pred_region
          %s351 = sand.u32 %s112, 1
          %s352 = scalar_lea.sflag [#allocation5], %s351
          %s353 = sand.u32 %s112, 1
          %s354 = scalar_lea.vmem [#allocation8], %s353
          %355 = dma.done %s352, 16
        $region60: #{tpu_custom_call.1} parent=55 // pred_fallthru
          _
      $region56: #{tpu_custom_call.1} parent=5 // pred_fallthru
        _
    $region6: #{tpu_custom_call.1} parent=1 // loop_footer
      %s20 = sadd.s32 1, %s16
    $region7: #{tpu_custom_call.1} parent=1 // loop_footer_branch
      %15 = sbr.rel target = $region3
    $region8: #{tpu_custom_call.1} parent=1 // loop_exit
      _
    %356 = vsyncpa [#allocation4], 1
    %s357 = scalar_lea.sflag [#allocation4], 1
    %358 = vsyncpa %s357, 1
    %359 = vsyncpa [#allocation7], 1
    %360 = vsyncpa [#allocation5], 1
    %s361 = scalar_lea.sflag [#allocation5], 1
    %362 = vsyncpa %s361, 1

</llo_original>
